<compile_context>
chip_gen: v6e
topology: v6e:2x2x1
jax: 0.10.0
libtpu: 0.0.40
codegen_flags: <defaults>
</compile_context>

<pallas_src>
import jax
import jax.numpy as jnp
from jax.experimental import pallas as pl
from jax.experimental.pallas import tpu as pltpu


def _spatial_softmax_kernel(x_ref, o_ref):
    # x_ref / o_ref: (rt, s) block in VMEM; softmax over the last (lane) axis.
    # Numerics in f32 regardless of the input dtype.
    x = x_ref[...].astype(jnp.float32)
    m = jnp.max(x, axis=-1, keepdims=True)
    e = jnp.exp(x - m)
    denom = jnp.sum(e, axis=-1, keepdims=True)
    # EUP approximate reciprocal (otherwise-idle slot) + one Newton-Raphson
    # refinement: avoids the exact-division VALU path, keeps ~f32 accuracy.
    inv = pl.reciprocal(denom, approx=True)
    inv = inv * (2.0 - denom * inv)
    o_ref[...] = (e * inv).astype(o_ref.dtype)


def _vmem_params():
    """(target_block_bytes, vmem_budget_bytes, vmem_limit_bytes) per chip gen."""
    mib = 1024 * 1024
    try:
        cap = int(pltpu.get_tpu_info().vmem_capacity_bytes)
    except Exception:
        cap = 64 * mib  # conservative: assume v7x-sized (64 MiB / TC) VMEM
    if cap >= 128 * mib:
        # v5e / v6e: 128 MiB physical VMEM -> big blocks, few grid steps.
        return 6 * mib, 56 * mib, 64 * mib
    # v7x (64 MiB per TensorCore) or smaller/unknown: stay well inside capacity.
    limit = min(40 * mib, (3 * cap) // 4)
    budget = (3 * limit) // 5
    return 2 * mib, budget, limit


def spatial_softmax(x):
    """x: (batch, c, w, w) -> softmax over the flattened w*w spatial axis."""
    batch, c, w, w2 = x.shape
    assert w == w2, "expects square spatial dims"
    rows = batch * c
    s = w * w
    itemsize = jnp.dtype(x.dtype).itemsize

    target_block_bytes, vmem_budget_bytes, vmem_limit_bytes = _vmem_params()

    # ---- layout alignment ---------------------------------------------------
    # Sublane alignment for the row axis (8 for 32-bit, 16 for 16-bit, ...).
    row_align = max(8, 32 // itemsize)
    # VMEM footprint per row (lane axis is padded to 128 inside VMEM only;
    # HBM traffic stays at the true s elements per row).
    s_vmem = pl.cdiv(s, 128) * 128

    # ---- row-tile selection (mem-bound => big, VMEM-safe tiles) --------------
    rt = max(row_align, target_block_bytes // (s_vmem * itemsize))
    # Cap: double-buffered input + output blocks plus f32 temporaries (x, e).
    bytes_per_row = s_vmem * (4 * itemsize + 8)
    rt_cap = max(row_align, vmem_budget_bytes // bytes_per_row)
    rt = min(rt, rt_cap)
    rt = max(row_align, (rt // row_align) * row_align)

    rows_aligned = pl.cdiv(rows, row_align) * row_align
    # Keep at least 2 grid steps when there is enough work: v7x has 2
    # TensorCores sharded over the "parallel" axis, and >=2 steps restores
    # double-buffered DMA overlap.  Costs only ~0.35us extra on 1-TC chips.
    n_min = 2 if rows_aligned >= 2 * row_align else 1
    grid_n = max(n_min, pl.cdiv(rows_aligned, rt))
    # Balance tiles across the grid (keeps the partial last block small) while
    # staying sublane-aligned and <= the VMEM cap.
    rt = pl.cdiv(pl.cdiv(rows_aligned, grid_n), row_align) * row_align
    if grid_n == 1:
        rt = rows  # single full-dim block: exempt from the 8-divisibility rule
    grid_n = pl.cdiv(rows, rt)

    # ---- run (no HBM padding, no post-slice) ----------------------------------
    x2d = x.reshape(rows, s)
    out2d = pl.pallas_call(
        _spatial_softmax_kernel,
        out_shape=jax.ShapeDtypeStruct((rows, s), x.dtype),
        grid=(grid_n,),
        # Lane axis = full array dim (s): exempt from the 128 rule, Mosaic
        # masks only the tail vreg.  Row axis: partial last block is fine
        # because rows are independent and OOB writes are masked.
        in_specs=[pl.BlockSpec((rt, s), lambda i: (i, 0))],
        out_specs=pl.BlockSpec((rt, s), lambda i: (i, 0)),
        compiler_params=pltpu.CompilerParams(
            dimension_semantics=("parallel",),
            vmem_limit_bytes=vmem_limit_bytes,
        ),
        cost_estimate=pl.CostEstimate(
            flops=5 * rows * s,
            transcendentals=rows * s,
            bytes_accessed=2 * rows * s * itemsize,
        ),
    )(x2d)

    return out2d.reshape(batch, c, w, w)


def _reference(x):
    batch, c, w, _ = x.shape
    h = x.reshape(batch, c, w * w)
    h = jax.nn.softmax(h, axis=2)
    return h.reshape(batch, c, w, w)


if __name__ == "__main__":
    key = jax.random.PRNGKey(0)
    x = jax.random.normal(key, (2, 4, 16, 16), dtype=jnp.float32)

    out = spatial_softmax(x)
    out = jax.block_until_ready(out)

    ref = _reference(x)
    assert out.shape == (2, 4, 16, 16)
    # rtol loosened to 1e-4 for the EUP-seeded (Newton-refined) reciprocal.
    assert jnp.allclose(out, ref, atol=1e-5, rtol=1e-4), "mismatch vs reference"

    print("KERNEL_OK")
</pallas_src>

<mosaic_0001>
module attributes {stable_mosaic.version = 11 : i64} {
  func.func @_spatial_softmax_kernel(%arg0: i32, %arg1: memref<8x256xf32, #tpu.memory_space<vmem>>, %arg2: memref<8x256xf32, #tpu.memory_space<vmem>>) attributes {dimension_semantics = [#tpu.dimension_semantics<parallel>], iteration_bounds = array<i64: 1>, scalar_prefetch = 0 : i64, scratch_operands = 0 : i64, tpu.core_type = #tpu.core_type<tc>, window_params = [{transform_indices = @transform_0, window_bounds = array<i64: 8, 256>}, {transform_indices = @transform_1, window_bounds = array<i64: 8, 256>}]} {
    %c0 = arith.constant 0 : index
    %c0_0 = arith.constant 0 : index
    %0 = vector.load %arg1[%c0, %c0_0] : memref<8x256xf32, #tpu.memory_space<vmem>>, vector<8x256xf32>
    %cst = arith.constant dense<0xFF800000> : vector<8xf32>
    %1 = vector.multi_reduction <maximumf>, %0, %cst [1] : vector<8x256xf32> to vector<8xf32>
    %2 = vector.shape_cast %1 : vector<8xf32> to vector<8x1xf32>
    %3 = vector.broadcast %2 : vector<8x1xf32> to vector<8x256xf32>
    %4 = arith.subf %0, %3 : vector<8x256xf32>
    %5 = math.exp %4 : vector<8x256xf32>
    %cst_1 = arith.constant dense<0.000000e+00> : vector<8xf32>
    %6 = vector.multi_reduction <add>, %5, %cst_1 [1] : vector<8x256xf32> to vector<8xf32>
    %7 = vector.shape_cast %6 : vector<8xf32> to vector<8x1xf32>
    %8 = tpu.reciprocal %7 {approx = true} : vector<8x1xf32> -> vector<8x1xf32>
    %9 = arith.mulf %7, %8 : vector<8x1xf32>
    %cst_2 = arith.constant 2.000000e+00 : f32
    %10 = vector.broadcast %cst_2 : f32 to vector<8x1xf32>
    %11 = arith.subf %10, %9 : vector<8x1xf32>
    %12 = arith.mulf %8, %11 : vector<8x1xf32>
    %13 = vector.broadcast %12 : vector<8x1xf32> to vector<8x256xf32>
    %14 = arith.mulf %5, %13 : vector<8x256xf32>
    %c0_3 = arith.constant 0 : index
    %c0_4 = arith.constant 0 : index
    %15 = vector.load %arg2[%c0_3, %c0_4] : memref<8x256xf32, #tpu.memory_space<vmem>>, vector<8x256xf32>
    tpu.vector_store %arg2[%c0_3, %c0_4], %14 {strides = array<i32>} : memref<8x256xf32, #tpu.memory_space<vmem>>, vector<8x256xf32>,
    return
  }
  func.func @transform_0(%arg0: i32) -> (i32, i32) {
    %c0_i32 = arith.constant 0 : i32
    %c0_i32_0 = arith.constant 0 : i32
    return %arg0, %c0_i32 : i32, i32
  }
  func.func @transform_1(%arg0: i32) -> (i32, i32) {
    %c0_i32 = arith.constant 0 : i32
    %c0_i32_0 = arith.constant 0 : i32
    return %arg0, %c0_i32 : i32, i32
  }
}

</mosaic_0001>

<llo_original>
// kernel: tpu_custom_call.1
$region0: #{tpu_custom_call.1}
  #allocation0 [shape = 'u32[]', space=smem, size = 0x4, offset = 0x4, fixed_abs, tag = 'smem constant byte address 0x4 - core index']
  #allocation1 [shape = 'u32[144,128]{1,0:T(1,128)}', space=vmem, size = 0x12000, scoped, tag = 'internal scratch']
  %s0 = inlined_call_operand.hbm [shape: f32[8,256], index: 0, kind: input, shape index: {}]
  %s1 = inlined_call_operand.hbm [shape: f32[8,256], index: 1, kind: output, shape index: {}]
  %s2 = sld [smem:[#allocation0]]
  $region18: #{tpu_custom_call.1} parent=0
    _
  %s4 = ssub.s32 1, %s2
  %s5 = scalar_select 0, %s4, %s2
  $region1: #{tpu_custom_call.1} parent=0
    #allocation2 [shape = 'u8[8192]{0}', space=vmem, size = 0x2000, scoped, tag = 'input window, operand 0, single buffered']
    #allocation3 [shape = 's32[1]{0}', space=sflag, size = 0x4, scoped, tag = 'scoped memory for tpu_custom_call.1']
    #allocation4 [shape = 's32[1]{0}', space=sflag, size = 0x4, scoped, tag = 'scoped memory for tpu_custom_call.1']
    #allocation5 [shape = 'u8[8192]{0}', space=vmem, size = 0x2000, scoped, tag = 'output window, operand 0, single buffered']
    %6 = vsyncpa [#allocation3], 0
    %7 = vsyncpa [#allocation4], 0
    // Predicated region
    $region2: #{tpu_custom_call.1} parent=1 // pred_check
      _
    $region3: #{tpu_custom_call.1} parent=1 // pred_check_branch
      %9 = sbr.rel (0) target = $region5
    $region4: #{tpu_custom_call.1} parent=1 // pred_region
      %s11 = ssub.s32 256, 256
      %12 = vsyncadd [#allocation3], %s11
      %s14 = sshll.u32 [#allocation2], 4
      %s15 = int_to_ptr.vmem [resolvable:$true] %s14
      %17 = dma.hbm_to_vmem [thread:$0]  %s0, 256, %s15, [#allocation3]
    $region5: #{tpu_custom_call.1} parent=1 // pred_fallthru
      _
    // Predicated region
    $region6: #{tpu_custom_call.1} parent=1 // pred_check
      _
    $region7: #{tpu_custom_call.1} parent=1 // pred_check_branch
      %19 = sbr.rel (0) target = $region9
    $region8: #{tpu_custom_call.1} parent=1 // pred_region
      %20 = dma.done [#allocation3], 256
    $region9: #{tpu_custom_call.1} parent=1 // pred_fallthru
      _
    %v21 = vld [vmem:[#allocation2] sm:$0xff]
    %v22 = vld [vmem:[#allocation2 + $0x8] sm:$0xff]
    %v23 = vmax.f32 %v21, %v22
    %24 = vmax.xlane.f32.xlu0 %v23
    %v25 = vpop.xlane.xlu0 %24
    %v26 = vsub.f32 %v21, %v25
    %v27 = vsub.f32 %v22, %v25
    %v28 = vmul.f32 %v26, 1.442695
    %v29 = vpow.pop %v28
    %v30 = vmul.f32 %v27, 1.442695
    %v31 = vpow.pop %v30
    %v32 = vadd.f32 %v29, %v31
    %33 = vadd.xlane.f32.xlu0 %v32
    %v34 = vpop.xlane.xlu0 %33
    %v35 = vrcp.pop %v34
    %v36 = vmul.f32 %v34, %v35
    %v37 = vsub.f32 2.0, %v36
    %v38 = vmul.f32 %v35, %v37
    %v39 = vmul.f32 %v29, %v38
    %v40 = vmul.f32 %v31, %v38
    %41 = vst [vmem:[#allocation5] sm:$0xff] %v39
    %42 = vst [vmem:[#allocation5 + $0x8] sm:$0xff] %v40
    // Predicated region
    $region10: #{tpu_custom_call.1} parent=1 // pred_check
      _
    $region11: #{tpu_custom_call.1} parent=1 // pred_check_branch
      %44 = sbr.rel (0) target = $region13
    $region12: #{tpu_custom_call.1} parent=1 // pred_region
      %s46 = ssub.s32 256, 256
      %47 = vsyncadd [#allocation4], %s46
      %s49 = sshll.u32 [#allocation5], 4
      %s50 = int_to_ptr.vmem [resolvable:$true] %s49
      %52 = dma.vmem_to_hbm [thread:$0]  %s50, 256, %s1, [#allocation4]
    $region13: #{tpu_custom_call.1} parent=1 // pred_fallthru
      _
    // Predicated region
    $region14: #{tpu_custom_call.1} parent=1 // pred_check
      _
    $region15: #{tpu_custom_call.1} parent=1 // pred_check_branch
      %54 = sbr.rel (0) target = $region17
    $region16: #{tpu_custom_call.1} parent=1 // pred_region
      %55 = dma.done [#allocation4], 256
    $region17: #{tpu_custom_call.1} parent=1 // pred_fallthru
      _
    %56 = vsyncpa [#allocation3], 1
    %57 = vsyncpa [#allocation4], 1

</llo_original>
